<compile_context>
chip_gen: v5e
topology: v5e:2x2
jax: 0.10.0
libtpu: 0.0.40
codegen_flags: <defaults>
</compile_context>

<pallas_src>
import functools

import jax
import jax.numpy as jnp
from jax.experimental import pallas as pl
from jax.experimental.pallas import tpu as pltpu

IN_FEATURES = 2048
DROP_P = 0.5
LANE = 128


def _round_up(n, m):
    return ((n + m - 1) // m) * m


def _linear_kernel(x_ref, w_ref, b_ref, o_ref):
    # eval mode: dropout == identity.  bf16 x/W on the MXU, f32 accumulation.
    y = jnp.dot(x_ref[...], w_ref[...], preferred_element_type=jnp.float32)
    o_ref[...] = y + b_ref[...]


def _dropout_linear_kernel(x_ref, m_ref, w_ref, b_ref, o_ref):
    # train mode: m_ref holds the scaled keep-mask {0, 1/(1-p)} in bf16.
    x = x_ref[...] * m_ref[...]
    y = jnp.dot(x, w_ref[...], preferred_element_type=jnp.float32)
    o_ref[...] = y + b_ref[...]


@functools.partial(jax.jit, static_argnames=("training",))
def classifier_forward(x, w_t, b, *, dropout_key=None, training=False):
    """x: (B, ...) with prod(...) == 2048.  w_t: (2048, C) (pre-transposed).  b: (C,)."""
    batch = x.shape[0]
    x2d = x.reshape(batch, -1)
    assert x2d.shape[1] == IN_FEATURES
    num_class = w_t.shape[1]
    c_pad = _round_up(num_class, LANE)

    # bf16 inputs / weights (halve HBM bytes), f32 bias & accumulation.
    x_bf = x2d.astype(jnp.bfloat16)
    w_bf = jnp.pad(w_t.astype(jnp.bfloat16), ((0, 0), (0, c_pad - num_class)))
    b_pad = jnp.pad(b.astype(jnp.float32), (0, c_pad - num_class)).reshape(1, c_pad)

    # Batch tile: 512 rows (multiple of 8) when the batch is large enough,
    # otherwise the full batch (block dim == full array dim is always legal).
    tb = 512 if batch >= 512 else batch
    grid = (pl.cdiv(batch, tb),)

    out_shape = jax.ShapeDtypeStruct((batch, c_pad), jnp.float32)
    compiler_params = pltpu.CompilerParams(dimension_semantics=("parallel",))

    x_spec = pl.BlockSpec((tb, IN_FEATURES), lambda i: (i, 0))
    w_spec = pl.BlockSpec((IN_FEATURES, c_pad), lambda i: (0, 0))  # resident
    b_spec = pl.BlockSpec((1, c_pad), lambda i: (0, 0))            # resident
    o_spec = pl.BlockSpec((tb, c_pad), lambda i: (i, 0))           # lane-dense

    if not training:
        out_full = pl.pallas_call(
            _linear_kernel,
            out_shape=out_shape,
            grid_spec=pltpu.PrefetchScalarGridSpec(
                num_scalar_prefetch=0,
                grid=grid,
                in_specs=[x_spec, w_spec, b_spec],
                out_specs=o_spec,
            ),
            compiler_params=compiler_params,
        )(x_bf, w_bf, b_pad)
    else:
        if dropout_key is None:
            dropout_key = jax.random.PRNGKey(0)
        keep = jax.random.bernoulli(dropout_key, 1.0 - DROP_P, (batch, IN_FEATURES))
        # scaled keep-mask: 0 or 1/(1-p) (= 2.0, exact in bf16)
        mask = keep.astype(jnp.bfloat16) * jnp.bfloat16(1.0 / (1.0 - DROP_P))
        out_full = pl.pallas_call(
            _dropout_linear_kernel,
            out_shape=out_shape,
            grid_spec=pltpu.PrefetchScalarGridSpec(
                num_scalar_prefetch=0,
                grid=grid,
                in_specs=[x_spec, x_spec, w_spec, b_spec],  # mask tiled like x
                out_specs=o_spec,
            ),
            compiler_params=compiler_params,
        )(x_bf, mask, w_bf, b_pad)

    return out_full[:, :num_class]


def init_classifier_params(key, num_class):
    """Deterministic init mirroring nn.Linear(2048, num_class) defaults."""
    k_w, k_b = jax.random.split(key)
    bound = 1.0 / (IN_FEATURES ** 0.5)
    # PyTorch stores weight as (num_class, 2048); we keep the transpose.
    w_t = jax.random.uniform(
        k_w, (IN_FEATURES, num_class), jnp.float32, -bound, bound)
    b = jax.random.uniform(k_b, (num_class,), jnp.float32, -bound, bound)
    return w_t, b


if __name__ == "__main__":
    num_class = 10
    key = jax.random.PRNGKey(0)
    k_x, k_p, k_d = jax.random.split(key, 3)

    # small NCHW input whose flatten gives 2048 features: (2, 512, 2, 2)
    x = jax.random.normal(k_x, (2, 512, 2, 2), dtype=jnp.float32)
    w_t, b = init_classifier_params(k_p, num_class)

    # eval-mode forward (dropout == identity), matching module.eval() semantics
    out = jax.block_until_ready(classifier_forward(x, w_t, b, training=False))
    assert out.shape == (2, num_class)

    # reference with the same bf16-input / f32-accumulation recipe
    x_bf = x.reshape(2, -1).astype(jnp.bfloat16)
    ref = jnp.dot(x_bf, w_t.astype(jnp.bfloat16),
                  preferred_element_type=jnp.float32) + b[None, :]
    assert jnp.allclose(out, ref, atol=2e-3, rtol=2e-3), float(
        jnp.max(jnp.abs(out - ref)))

    # exercise the train-mode (dropout) kernel once
    out_train = jax.block_until_ready(
        classifier_forward(x, w_t, b, dropout_key=k_d, training=True))
    assert out_train.shape == (2, num_class)
    assert bool(jnp.all(jnp.isfinite(out_train)))

    print("KERNEL_OK")
</pallas_src>

<mosaic_0001>
module attributes {stable_mosaic.version = 11 : i64} {
  func.func @_linear_kernel(%arg0: i32, %arg1: memref<2x2048xbf16, #tpu.memory_space<vmem>>, %arg2: memref<2048x128xbf16, #tpu.memory_space<vmem>>, %arg3: memref<1x128xf32, #tpu.memory_space<vmem>>, %arg4: memref<2x128xf32, #tpu.memory_space<vmem>>) attributes {dimension_semantics = [#tpu.dimension_semantics<parallel>], iteration_bounds = array<i64: 1>, scalar_prefetch = 0 : i64, scratch_operands = 0 : i64, tpu.core_type = #tpu.core_type<tc>, window_params = [{transform_indices = @transform_0, window_bounds = array<i64: 2, 2048>}, {pipeline_mode = #tpu.pipeline_mode<synchronous>, transform_indices = @transform_1, window_bounds = array<i64: 2048, 128>}, {pipeline_mode = #tpu.pipeline_mode<synchronous>, transform_indices = @transform_2, window_bounds = array<i64: 1, 128>}, {transform_indices = @transform_3, window_bounds = array<i64: 2, 128>}]} {
    %c0 = arith.constant 0 : index
    %c0_0 = arith.constant 0 : index
    %0 = vector.load %arg1[%c0, %c0_0] : memref<2x2048xbf16, #tpu.memory_space<vmem>>, vector<2x2048xbf16>
    %c0_1 = arith.constant 0 : index
    %c0_2 = arith.constant 0 : index
    %1 = vector.load %arg2[%c0_1, %c0_2] : memref<2048x128xbf16, #tpu.memory_space<vmem>>, vector<2048x128xbf16>
    %cst = arith.constant dense<0.000000e+00> : vector<2x128xf32>
    %2 = tpu.matmul %0, %1, %cst {dimension_numbers = #tpu.dot_dimension_numbers<[1], [0], [0], [1], [0, 0, 1, 1], [], []>} : vector<2x2048xbf16>, vector<2048x128xbf16>, vector<2x128xf32> -> vector<2x128xf32>
    %c0_3 = arith.constant 0 : index
    %c0_4 = arith.constant 0 : index
    %3 = vector.load %arg3[%c0_3, %c0_4] : memref<1x128xf32, #tpu.memory_space<vmem>>, vector<1x128xf32>
    %4 = vector.broadcast %3 : vector<1x128xf32> to vector<2x128xf32>
    %5 = arith.addf %2, %4 : vector<2x128xf32>
    %c0_5 = arith.constant 0 : index
    %c0_6 = arith.constant 0 : index
    %6 = vector.load %arg4[%c0_5, %c0_6] : memref<2x128xf32, #tpu.memory_space<vmem>>, vector<2x128xf32>
    tpu.vector_store %arg4[%c0_5, %c0_6], %5 {strides = array<i32>} : memref<2x128xf32, #tpu.memory_space<vmem>>, vector<2x128xf32>,
    return
  }
  func.func @transform_0(%arg0: i32) -> (i32, i32) {
    %c0_i32 = arith.constant 0 : i32
    %c0_i32_0 = arith.constant 0 : i32
    return %arg0, %c0_i32 : i32, i32
  }
  func.func @transform_1(%arg0: i32) -> (i32, i32) {
    %c0_i32 = arith.constant 0 : i32
    %c0_i32_0 = arith.constant 0 : i32
    %c0_i32_1 = arith.constant 0 : i32
    return %c0_i32, %c0_i32_0 : i32, i32
  }
  func.func @transform_2(%arg0: i32) -> (i32, i32) {
    %c0_i32 = arith.constant 0 : i32
    %c0_i32_0 = arith.constant 0 : i32
    %c0_i32_1 = arith.constant 0 : i32
    return %c0_i32, %c0_i32_0 : i32, i32
  }
  func.func @transform_3(%arg0: i32) -> (i32, i32) {
    %c0_i32 = arith.constant 0 : i32
    %c0_i32_0 = arith.constant 0 : i32
    return %arg0, %c0_i32 : i32, i32
  }
}

</mosaic_0001>

<llo_original>
// kernel: classifier_forward.1
$region0: #{classifier_forward.1}
  #allocation0 [shape = 'u32[]', space=smem, size = 0x4, offset = 0x4, fixed_abs, tag = 'smem constant byte address 0x4 - core index']
  #allocation1 [shape = 'u32[72,128]{1,0:T(1,128)}', space=vmem, size = 0x9000, scoped, tag = 'internal scratch']
  %s0 = inlined_call_operand.vmem [shape: bf16[2,2048], index: 0, kind: input, shape index: {}]
  %s1 = inlined_call_operand.vmem [shape: bf16[2048,128], index: 1, kind: input, shape index: {}]
  %s2 = inlined_call_operand.vmem [shape: f32[1,128], index: 2, kind: input, shape index: {}]
  %s3 = inlined_call_operand.hbm [shape: f32[2,128], index: 3, kind: output, shape index: {}]
  %s4 = sld [smem:[#allocation0]]
  $region22: #{classifier_forward.1} parent=0
    _
  %s6 = ssub.s32 1, %s4
  %s7 = scalar_select 0, %s6, %s4
  $region1: #{classifier_forward.1} parent=0
    #allocation2 [shape = 'u8[1024]{0}', space=vmem, size = 0x400, scoped, tag = 'output window, operand 0, single buffered']
    #allocation3 [shape = 's32[1]{0}', space=sflag, size = 0x4, scoped, tag = 'scoped memory for classifier_forward.1']
    %8 = vsyncpa [#allocation3], 0
    // Predicated region
    $region2: #{classifier_forward.1} parent=1 // pred_check
      _
    $region3: #{classifier_forward.1} parent=1 // pred_check_branch
      %10 = sbr.rel (0) target = $region5
    $region4: #{classifier_forward.1} parent=1 // pred_region
      _
    $region5: #{classifier_forward.1} parent=1 // pred_fallthru
      _
    // Predicated region
    $region6: #{classifier_forward.1} parent=1 // pred_check
      _
    $region7: #{classifier_forward.1} parent=1 // pred_check_branch
      %12 = sbr.rel (0) target = $region9
    $region8: #{classifier_forward.1} parent=1 // pred_region
      _
    $region9: #{classifier_forward.1} parent=1 // pred_fallthru
      _
    // Predicated region
    $region10: #{classifier_forward.1} parent=1 // pred_check
      _
    $region11: #{classifier_forward.1} parent=1 // pred_check_branch
      %14 = sbr.rel (0) target = $region13
    $region12: #{classifier_forward.1} parent=1 // pred_region
      _
    $region13: #{classifier_forward.1} parent=1 // pred_fallthru
      _
    %v15 = vld [vmem:[%s0] sm:$0xff]
    %v16 = vld [vmem:[%s0 + $0x8] sm:$0xff]
    %v17 = vld [vmem:[%s1] sm:$0xf]
    %v18 = vld [vmem:[%s1 + $0x4] sm:$0xf]
    %v19 = vld [vmem:[%s1 + $0x8] sm:$0xf]
    %v20 = vld [vmem:[%s1 + $0xc] sm:$0xf]
    %v21 = vld [vmem:[%s1 + $0x10] sm:$0xf]
    %v22 = vld [vmem:[%s1 + $0x14] sm:$0xf]
    %v23 = vld [vmem:[%s1 + $0x18] sm:$0xf]
    %v24 = vld [vmem:[%s1 + $0x1c] sm:$0xf]
    %v25 = vld [vmem:[%s1 + $0x20] sm:$0xf]
    %v26 = vld [vmem:[%s1 + $0x24] sm:$0xf]
    %v27 = vld [vmem:[%s1 + $0x28] sm:$0xf]
    %v28 = vld [vmem:[%s1 + $0x2c] sm:$0xf]
    %v29 = vld [vmem:[%s1 + $0x30] sm:$0xf]
    %v30 = vld [vmem:[%s1 + $0x34] sm:$0xf]
    %v31 = vld [vmem:[%s1 + $0x38] sm:$0xf]
    %v32 = vld [vmem:[%s1 + $0x3c] sm:$0xf]
    %v33 = vld [vmem:[%s1 + $0x40] sm:$0xf]
    %v34 = vld [vmem:[%s1 + $0x44] sm:$0xf]
    %v35 = vld [vmem:[%s1 + $0x48] sm:$0xf]
    %v36 = vld [vmem:[%s1 + $0x4c] sm:$0xf]
    %v37 = vld [vmem:[%s1 + $0x50] sm:$0xf]
    %v38 = vld [vmem:[%s1 + $0x54] sm:$0xf]
    %v39 = vld [vmem:[%s1 + $0x58] sm:$0xf]
    %v40 = vld [vmem:[%s1 + $0x5c] sm:$0xf]
    %v41 = vld [vmem:[%s1 + $0x60] sm:$0xf]
    %v42 = vld [vmem:[%s1 + $0x64] sm:$0xf]
    %v43 = vld [vmem:[%s1 + $0x68] sm:$0xf]
    %v44 = vld [vmem:[%s1 + $0x6c] sm:$0xf]
    %v45 = vld [vmem:[%s1 + $0x70] sm:$0xf]
    %v46 = vld [vmem:[%s1 + $0x74] sm:$0xf]
    %v47 = vld [vmem:[%s1 + $0x78] sm:$0xf]
    %v48 = vld [vmem:[%s1 + $0x7c] sm:$0xf]
    %v49 = vld [vmem:[%s1 + $0x80] sm:$0xf]
    %v50 = vld [vmem:[%s1 + $0x84] sm:$0xf]
    %v51 = vld [vmem:[%s1 + $0x88] sm:$0xf]
    %v52 = vld [vmem:[%s1 + $0x8c] sm:$0xf]
    %v53 = vld [vmem:[%s1 + $0x90] sm:$0xf]
    %v54 = vld [vmem:[%s1 + $0x94] sm:$0xf]
    %v55 = vld [vmem:[%s1 + $0x98] sm:$0xf]
    %v56 = vld [vmem:[%s1 + $0x9c] sm:$0xf]
    %v57 = vld [vmem:[%s1 + $0xa0] sm:$0xf]
    %v58 = vld [vmem:[%s1 + $0xa4] sm:$0xf]
    %v59 = vld [vmem:[%s1 + $0xa8] sm:$0xf]
    %v60 = vld [vmem:[%s1 + $0xac] sm:$0xf]
    %v61 = vld [vmem:[%s1 + $0xb0] sm:$0xf]
    %v62 = vld [vmem:[%s1 + $0xb4] sm:$0xf]
    %v63 = vld [vmem:[%s1 + $0xb8] sm:$0xf]
    %v64 = vld [vmem:[%s1 + $0xbc] sm:$0xf]
    %v65 = vld [vmem:[%s1 + $0xc0] sm:$0xf]
    %v66 = vld [vmem:[%s1 + $0xc4] sm:$0xf]
    %v67 = vld [vmem:[%s1 + $0xc8] sm:$0xf]
    %v68 = vld [vmem:[%s1 + $0xcc] sm:$0xf]
    %v69 = vld [vmem:[%s1 + $0xd0] sm:$0xf]
    %v70 = vld [vmem:[%s1 + $0xd4] sm:$0xf]
    %v71 = vld [vmem:[%s1 + $0xd8] sm:$0xf]
    %v72 = vld [vmem:[%s1 + $0xdc] sm:$0xf]
    %v73 = vld [vmem:[%s1 + $0xe0] sm:$0xf]
    %v74 = vld [vmem:[%s1 + $0xe4] sm:$0xf]
    %v75 = vld [vmem:[%s1 + $0xe8] sm:$0xf]
    %v76 = vld [vmem:[%s1 + $0xec] sm:$0xf]
    %v77 = vld [vmem:[%s1 + $0xf0] sm:$0xf]
    %v78 = vld [vmem:[%s1 + $0xf4] sm:$0xf]
    %v79 = vld [vmem:[%s1 + $0xf8] sm:$0xf]
    %v80 = vld [vmem:[%s1 + $0xfc] sm:$0xf]
    %v81 = vld [vmem:[%s1 + $0x100] sm:$0xf]
    %v82 = vld [vmem:[%s1 + $0x104] sm:$0xf]
    %v83 = vld [vmem:[%s1 + $0x108] sm:$0xf]
    %v84 = vld [vmem:[%s1 + $0x10c] sm:$0xf]
    %v85 = vld [vmem:[%s1 + $0x110] sm:$0xf]
    %v86 = vld [vmem:[%s1 + $0x114] sm:$0xf]
    %v87 = vld [vmem:[%s1 + $0x118] sm:$0xf]
    %v88 = vld [vmem:[%s1 + $0x11c] sm:$0xf]
    %v89 = vld [vmem:[%s1 + $0x120] sm:$0xf]
    %v90 = vld [vmem:[%s1 + $0x124] sm:$0xf]
    %v91 = vld [vmem:[%s1 + $0x128] sm:$0xf]
    %v92 = vld [vmem:[%s1 + $0x12c] sm:$0xf]
    %v93 = vld [vmem:[%s1 + $0x130] sm:$0xf]
    %v94 = vld [vmem:[%s1 + $0x134] sm:$0xf]
    %v95 = vld [vmem:[%s1 + $0x138] sm:$0xf]
    %v96 = vld [vmem:[%s1 + $0x13c] sm:$0xf]
    %v97 = vld [vmem:[%s1 + $0x140] sm:$0xf]
    %v98 = vld [vmem:[%s1 + $0x144] sm:$0xf]
    %v99 = vld [vmem:[%s1 + $0x148] sm:$0xf]
    %v100 = vld [vmem:[%s1 + $0x14c] sm:$0xf]
    %v101 = vld [vmem:[%s1 + $0x150] sm:$0xf]
    %v102 = vld [vmem:[%s1 + $0x154] sm:$0xf]
    %v103 = vld [vmem:[%s1 + $0x158] sm:$0xf]
    %v104 = vld [vmem:[%s1 + $0x15c] sm:$0xf]
    %v105 = vld [vmem:[%s1 + $0x160] sm:$0xf]
    %v106 = vld [vmem:[%s1 + $0x164] sm:$0xf]
    %v107 = vld [vmem:[%s1 + $0x168] sm:$0xf]
    %v108 = vld [vmem:[%s1 + $0x16c] sm:$0xf]
    %v109 = vld [vmem:[%s1 + $0x170] sm:$0xf]
    %v110 = vld [vmem:[%s1 + $0x174] sm:$0xf]
    %v111 = vld [vmem:[%s1 + $0x178] sm:$0xf]
    %v112 = vld [vmem:[%s1 + $0x17c] sm:$0xf]
    %v113 = vld [vmem:[%s1 + $0x180] sm:$0xf]
    %v114 = vld [vmem:[%s1 + $0x184] sm:$0xf]
    %v115 = vld [vmem:[%s1 + $0x188] sm:$0xf]
    %v116 = vld [vmem:[%s1 + $0x18c] sm:$0xf]
    %v117 = vld [vmem:[%s1 + $0x190] sm:$0xf]
    %v118 = vld [vmem:[%s1 + $0x194] sm:$0xf]
    %v119 = vld [vmem:[%s1 + $0x198] sm:$0xf]
    %v120 = vld [vmem:[%s1 + $0x19c] sm:$0xf]
    %v121 = vld [vmem:[%s1 + $0x1a0] sm:$0xf]
    %v122 = vld [vmem:[%s1 + $0x1a4] sm:$0xf]
    %v123 = vld [vmem:[%s1 + $0x1a8] sm:$0xf]
    %v124 = vld [vmem:[%s1 + $0x1ac] sm:$0xf]
    %v125 = vld [vmem:[%s1 + $0x1b0] sm:$0xf]
    %v126 = vld [vmem:[%s1 + $0x1b4] sm:$0xf]
    %v127 = vld [vmem:[%s1 + $0x1b8] sm:$0xf]
    %v128 = vld [vmem:[%s1 + $0x1bc] sm:$0xf]
    %v129 = vld [vmem:[%s1 + $0x1c0] sm:$0xf]
    %v130 = vld [vmem:[%s1 + $0x1c4] sm:$0xf]
    %v131 = vld [vmem:[%s1 + $0x1c8] sm:$0xf]
    %v132 = vld [vmem:[%s1 + $0x1cc] sm:$0xf]
    %v133 = vld [vmem:[%s1 + $0x1d0] sm:$0xf]
    %v134 = vld [vmem:[%s1 + $0x1d4] sm:$0xf]
    %v135 = vld [vmem:[%s1 + $0x1d8] sm:$0xf]
    %v136 = vld [vmem:[%s1 + $0x1dc] sm:$0xf]
    %v137 = vld [vmem:[%s1 + $0x1e0] sm:$0xf]
    %v138 = vld [vmem:[%s1 + $0x1e4] sm:$0xf]
    %v139 = vld [vmem:[%s1 + $0x1e8] sm:$0xf]
    %v140 = vld [vmem:[%s1 + $0x1ec] sm:$0xf]
    %v141 = vld [vmem:[%s1 + $0x1f0] sm:$0xf]
    %v142 = vld [vmem:[%s1 + $0x1f4] sm:$0xf]
    %v143 = vld [vmem:[%s1 + $0x1f8] sm:$0xf]
    %v144 = vld [vmem:[%s1 + $0x1fc] sm:$0xf]
    %v145 = vld [vmem:[%s1 + $0x200] sm:$0xf]
    %v146 = vld [vmem:[%s1 + $0x204] sm:$0xf]
    %v147 = vld [vmem:[%s1 + $0x208] sm:$0xf]
    %v148 = vld [vmem:[%s1 + $0x20c] sm:$0xf]
    %v149 = vld [vmem:[%s1 + $0x210] sm:$0xf]
    %v150 = vld [vmem:[%s1 + $0x214] sm:$0xf]
    %v151 = vld [vmem:[%s1 + $0x218] sm:$0xf]
    %v152 = vld [vmem:[%s1 + $0x21c] sm:$0xf]
    %v153 = vld [vmem:[%s1 + $0x220] sm:$0xf]
    %v154 = vld [vmem:[%s1 + $0x224] sm:$0xf]
    %v155 = vld [vmem:[%s1 + $0x228] sm:$0xf]
    %v156 = vld [vmem:[%s1 + $0x22c] sm:$0xf]
    %v157 = vld [vmem:[%s1 + $0x230] sm:$0xf]
    %v158 = vld [vmem:[%s1 + $0x234] sm:$0xf]
    %v159 = vld [vmem:[%s1 + $0x238] sm:$0xf]
    %v160 = vld [vmem:[%s1 + $0x23c] sm:$0xf]
    %v161 = vld [vmem:[%s1 + $0x240] sm:$0xf]
    %v162 = vld [vmem:[%s1 + $0x244] sm:$0xf]
    %v163 = vld [vmem:[%s1 + $0x248] sm:$0xf]
    %v164 = vld [vmem:[%s1 + $0x24c] sm:$0xf]
    %v165 = vld [vmem:[%s1 + $0x250] sm:$0xf]
    %v166 = vld [vmem:[%s1 + $0x254] sm:$0xf]
    %v167 = vld [vmem:[%s1 + $0x258] sm:$0xf]
    %v168 = vld [vmem:[%s1 + $0x25c] sm:$0xf]
    %v169 = vld [vmem:[%s1 + $0x260] sm:$0xf]
    %v170 = vld [vmem:[%s1 + $0x264] sm:$0xf]
    %v171 = vld [vmem:[%s1 + $0x268] sm:$0xf]
    %v172 = vld [vmem:[%s1 + $0x26c] sm:$0xf]
    %v173 = vld [vmem:[%s1 + $0x270] sm:$0xf]
    %v174 = vld [vmem:[%s1 + $0x274] sm:$0xf]
    %v175 = vld [vmem:[%s1 + $0x278] sm:$0xf]
    %v176 = vld [vmem:[%s1 + $0x27c] sm:$0xf]
    %v177 = vld [vmem:[%s1 + $0x280] sm:$0xf]
    %v178 = vld [vmem:[%s1 + $0x284] sm:$0xf]
    %v179 = vld [vmem:[%s1 + $0x288] sm:$0xf]
    %v180 = vld [vmem:[%s1 + $0x28c] sm:$0xf]
    %v181 = vld [vmem:[%s1 + $0x290] sm:$0xf]
    %v182 = vld [vmem:[%s1 + $0x294] sm:$0xf]
    %v183 = vld [vmem:[%s1 + $0x298] sm:$0xf]
    %v184 = vld [vmem:[%s1 + $0x29c] sm:$0xf]
    %v185 = vld [vmem:[%s1 + $0x2a0] sm:$0xf]
    %v186 = vld [vmem:[%s1 + $0x2a4] sm:$0xf]
    %v187 = vld [vmem:[%s1 + $0x2a8] sm:$0xf]
    %v188 = vld [vmem:[%s1 + $0x2ac] sm:$0xf]
    %v189 = vld [vmem:[%s1 + $0x2b0] sm:$0xf]
    %v190 = vld [vmem:[%s1 + $0x2b4] sm:$0xf]
    %v191 = vld [vmem:[%s1 + $0x2b8] sm:$0xf]
    %v192 = vld [vmem:[%s1 + $0x2bc] sm:$0xf]
    %v193 = vld [vmem:[%s1 + $0x2c0] sm:$0xf]
    %v194 = vld [vmem:[%s1 + $0x2c4] sm:$0xf]
    %v195 = vld [vmem:[%s1 + $0x2c8] sm:$0xf]
    %v196 = vld [vmem:[%s1 + $0x2cc] sm:$0xf]
    %v197 = vld [vmem:[%s1 + $0x2d0] sm:$0xf]
    %v198 = vld [vmem:[%s1 + $0x2d4] sm:$0xf]
    %v199 = vld [vmem:[%s1 + $0x2d8] sm:$0xf]
    %v200 = vld [vmem:[%s1 + $0x2dc] sm:$0xf]
    %v201 = vld [vmem:[%s1 + $0x2e0] sm:$0xf]
    %v202 = vld [vmem:[%s1 + $0x2e4] sm:$0xf]
    %v203 = vld [vmem:[%s1 + $0x2e8] sm:$0xf]
    %v204 = vld [vmem:[%s1 + $0x2ec] sm:$0xf]
    %v205 = vld [vmem:[%s1 + $0x2f0] sm:$0xf]
    %v206 = vld [vmem:[%s1 + $0x2f4] sm:$0xf]
    %v207 = vld [vmem:[%s1 + $0x2f8] sm:$0xf]
    %v208 = vld [vmem:[%s1 + $0x2fc] sm:$0xf]
    %v209 = vld [vmem:[%s1 + $0x300] sm:$0xf]
    %v210 = vld [vmem:[%s1 + $0x304] sm:$0xf]
    %v211 = vld [vmem:[%s1 + $0x308] sm:$0xf]
    %v212 = vld [vmem:[%s1 + $0x30c] sm:$0xf]
    %v213 = vld [vmem:[%s1 + $0x310] sm:$0xf]
    %v214 = vld [vmem:[%s1 + $0x314] sm:$0xf]
    %v215 = vld [vmem:[%s1 + $0x318] sm:$0xf]
    %v216 = vld [vmem:[%s1 + $0x31c] sm:$0xf]
    %v217 = vld [vmem:[%s1 + $0x320] sm:$0xf]
    %v218 = vld [vmem:[%s1 + $0x324] sm:$0xf]
    %v219 = vld [vmem:[%s1 + $0x328] sm:$0xf]
    %v220 = vld [vmem:[%s1 + $0x32c] sm:$0xf]
    %v221 = vld [vmem:[%s1 + $0x330] sm:$0xf]
    %v222 = vld [vmem:[%s1 + $0x334] sm:$0xf]
    %v223 = vld [vmem:[%s1 + $0x338] sm:$0xf]
    %v224 = vld [vmem:[%s1 + $0x33c] sm:$0xf]
    %v225 = vld [vmem:[%s1 + $0x340] sm:$0xf]
    %v226 = vld [vmem:[%s1 + $0x344] sm:$0xf]
    %v227 = vld [vmem:[%s1 + $0x348] sm:$0xf]
    %v228 = vld [vmem:[%s1 + $0x34c] sm:$0xf]
    %v229 = vld [vmem:[%s1 + $0x350] sm:$0xf]
    %v230 = vld [vmem:[%s1 + $0x354] sm:$0xf]
    %v231 = vld [vmem:[%s1 + $0x358] sm:$0xf]
    %v232 = vld [vmem:[%s1 + $0x35c] sm:$0xf]
    %v233 = vld [vmem:[%s1 + $0x360] sm:$0xf]
    %v234 = vld [vmem:[%s1 + $0x364] sm:$0xf]
    %v235 = vld [vmem:[%s1 + $0x368] sm:$0xf]
    %v236 = vld [vmem:[%s1 + $0x36c] sm:$0xf]
    %v237 = vld [vmem:[%s1 + $0x370] sm:$0xf]
    %v238 = vld [vmem:[%s1 + $0x374] sm:$0xf]
    %v239 = vld [vmem:[%s1 + $0x378] sm:$0xf]
    %v240 = vld [vmem:[%s1 + $0x37c] sm:$0xf]
    %v241 = vld [vmem:[%s1 + $0x380] sm:$0xf]
    %v242 = vld [vmem:[%s1 + $0x384] sm:$0xf]
    %v243 = vld [vmem:[%s1 + $0x388] sm:$0xf]
    %v244 = vld [vmem:[%s1 + $0x38c] sm:$0xf]
    %v245 = vld [vmem:[%s1 + $0x390] sm:$0xf]
    %v246 = vld [vmem:[%s1 + $0x394] sm:$0xf]
    %v247 = vld [vmem:[%s1 + $0x398] sm:$0xf]
    %v248 = vld [vmem:[%s1 + $0x39c] sm:$0xf]
    %v249 = vld [vmem:[%s1 + $0x3a0] sm:$0xf]
    %v250 = vld [vmem:[%s1 + $0x3a4] sm:$0xf]
    %v251 = vld [vmem:[%s1 + $0x3a8] sm:$0xf]
    %v252 = vld [vmem:[%s1 + $0x3ac] sm:$0xf]
    %v253 = vld [vmem:[%s1 + $0x3b0] sm:$0xf]
    %v254 = vld [vmem:[%s1 + $0x3b4] sm:$0xf]
    %v255 = vld [vmem:[%s1 + $0x3b8] sm:$0xf]
    %v256 = vld [vmem:[%s1 + $0x3bc] sm:$0xf]
    %v257 = vld [vmem:[%s1 + $0x3c0] sm:$0xf]
    %v258 = vld [vmem:[%s1 + $0x3c4] sm:$0xf]
    %v259 = vld [vmem:[%s1 + $0x3c8] sm:$0xf]
    %v260 = vld [vmem:[%s1 + $0x3cc] sm:$0xf]
    %v261 = vld [vmem:[%s1 + $0x3d0] sm:$0xf]
    %v262 = vld [vmem:[%s1 + $0x3d4] sm:$0xf]
    %v263 = vld [vmem:[%s1 + $0x3d8] sm:$0xf]
    %v264 = vld [vmem:[%s1 + $0x3dc] sm:$0xf]
    %v265 = vld [vmem:[%s1 + $0x3e0] sm:$0xf]
    %v266 = vld [vmem:[%s1 + $0x3e4] sm:$0xf]
    %v267 = vld [vmem:[%s1 + $0x3e8] sm:$0xf]
    %v268 = vld [vmem:[%s1 + $0x3ec] sm:$0xf]
    %v269 = vld [vmem:[%s1 + $0x3f0] sm:$0xf]
    %v270 = vld [vmem:[%s1 + $0x3f4] sm:$0xf]
    %v271 = vld [vmem:[%s1 + $0x3f8] sm:$0xf]
    %v272 = vld [vmem:[%s1 + $0x3fc] sm:$0xf]
    %v273 = vld [vmem:[%s2] sm:$0x1]
    %v275 = vperm.slane %v273, 0
    %278 = vst [vmem:[#allocation1] ss:$9 sm:$0xff] %v15
    %v279 = vld [vmem:[#allocation1] sm:$0xff]
    %v280 = vld [vmem:[#allocation1 + $0x9] sm:$0xff]
    %v281 = vld [vmem:[#allocation1 + $0x12] sm:$0xff]
    %v282 = vld [vmem:[#allocation1 + $0x1b] sm:$0xff]
    %v283 = vld [vmem:[#allocation1 + $0x24] sm:$0xff]
    %v284 = vld [vmem:[#allocation1 + $0x2d] sm:$0xff]
    %v285 = vld [vmem:[#allocation1 + $0x36] sm:$0xff]
    %v286 = vld [vmem:[#allocation1 + $0x3f] sm:$0xff]
    %288 = vst [vmem:[#allocation1] ss:$9 sm:$0xff] %v16
    %v289 = vld [vmem:[#allocation1] sm:$0xff]
    %v290 = vld [vmem:[#allocation1 + $0x9] sm:$0xff]
    %v291 = vld [vmem:[#allocation1 + $0x12] sm:$0xff]
    %v292 = vld [vmem:[#allocation1 + $0x1b] sm:$0xff]
    %v293 = vld [vmem:[#allocation1 + $0x24] sm:$0xff]
    %v294 = vld [vmem:[#allocation1 + $0x2d] sm:$0xff]
    %v295 = vld [vmem:[#allocation1 + $0x36] sm:$0xff]
    %v296 = vld [vmem:[#allocation1 + $0x3f] sm:$0xff]
    %v569 = vunpack.c.l.b16 %v17
    %v570 = vunpack.c.l.b16 %v18
    %v571 = vunpack.c.l.b16 %v19
    %v572 = vunpack.c.l.b16 %v20
    %v573 = vunpack.c.l.b16 %v21
    %v574 = vunpack.c.l.b16 %v22
    %v575 = vunpack.c.l.b16 %v23
    %v576 = vunpack.c.l.b16 %v24
    %v577 = vunpack.c.l.b16 %v25
    %v578 = vunpack.c.l.b16 %v26
    %v579 = vunpack.c.l.b16 %v27
    %v580 = vunpack.c.l.b16 %v28
    %v581 = vunpack.c.l.b16 %v29
    %v582 = vunpack.c.l.b16 %v30
    %v583 = vunpack.c.l.b16 %v31
    %v584 = vunpack.c.l.b16 %v32
    %v585 = vunpack.c.l.b16 %v33
    %v586 = vunpack.c.l.b16 %v34
    %v587 = vunpack.c.l.b16 %v35
    %v588 = vunpack.c.l.b16 %v36
    %v589 = vunpack.c.l.b16 %v37
    %v590 = vunpack.c.l.b16 %v38
    %v591 = vunpack.c.l.b16 %v39
    %v592 = vunpack.c.l.b16 %v40
    %v593 = vunpack.c.l.b16 %v41
    %v594 = vunpack.c.l.b16 %v42
    %v595 = vunpack.c.l.b16 %v43
    %v596 = vunpack.c.l.b16 %v44
    %v597 = vunpack.c.l.b16 %v45
    %v598 = vunpack.c.l.b16 %v46
    %v599 = vunpack.c.l.b16 %v47
    %v600 = vunpack.c.l.b16 %v48
    %v601 = vunpack.c.l.b16 %v49
    %v602 = vunpack.c.l.b16 %v50
    %v603 = vunpack.c.l.b16 %v51
    %v604 = vunpack.c.l.b16 %v52
    %v605 = vunpack.c.l.b16 %v53
    %v606 = vunpack.c.l.b16 %v54
    %v607 = vunpack.c.l.b16 %v55
    %v608 = vunpack.c.l.b16 %v56
    %v609 = vunpack.c.l.b16 %v57
    %v610 = vunpack.c.l.b16 %v58
    %v611 = vunpack.c.l.b16 %v59
    %v612 = vunpack.c.l.b16 %v60
    %v613 = vunpack.c.l.b16 %v61
    %v614 = vunpack.c.l.b16 %v62
    %v615 = vunpack.c.l.b16 %v63
    %v616 = vunpack.c.l.b16 %v64
    %v617 = vunpack.c.l.b16 %v65
    %v618 = vunpack.c.l.b16 %v66
    %v619 = vunpack.c.l.b16 %v67
    %v620 = vunpack.c.l.b16 %v68
    %v621 = vunpack.c.l.b16 %v69
    %v622 = vunpack.c.l.b16 %v70
    %v623 = vunpack.c.l.b16 %v71
    %v624 = vunpack.c.l.b16 %v72
    %v625 = vunpack.c.l.b16 %v73
    %v626 = vunpack.c.l.b16 %v74
    %v627 = vunpack.c.l.b16 %v75
    %v628 = vunpack.c.l.b16 %v76
    %v629 = vunpack.c.l.b16 %v77
    %v630 = vunpack.c.l.b16 %v78
    %v631 = vunpack.c.l.b16 %v79
    %v632 = vunpack.c.l.b16 %v80
    %v633 = vunpack.c.l.b16 %v81
    %v634 = vunpack.c.l.b16 %v82
    %v635 = vunpack.c.l.b16 %v83
    %v636 = vunpack.c.l.b16 %v84
    %v637 = vunpack.c.l.b16 %v85
    %v638 = vunpack.c.l.b16 %v86
    %v639 = vunpack.c.l.b16 %v87
    %v640 = vunpack.c.l.b16 %v88
    %v641 = vunpack.c.l.b16 %v89
    %v642 = vunpack.c.l.b16 %v90
    %v643 = vunpack.c.l.b16 %v91
    %v644 = vunpack.c.l.b16 %v92
    %v645 = vunpack.c.l.b16 %v93
    %v646 = vunpack.c.l.b16 %v94
    %v647 = vunpack.c.l.b16 %v95
    %v648 = vunpack.c.l.b16 %v96
    %v649 = vunpack.c.l.b16 %v97
    %v650 = vunpack.c.l.b16 %v98
    %v651 = vunpack.c.l.b16 %v99
    %v652 = vunpack.c.l.b16 %v100
    %v653 = vunpack.c.l.b16 %v101
    %v654 = vunpack.c.l.b16 %v102
    %v655 = vunpack.c.l.b16 %v103
    %v656 = vunpack.c.l.b16 %v104
    %v657 = vunpack.c.l.b16 %v105
    %v658 = vunpack.c.l.b16 %v106
    %v659 = vunpack.c.l.b16 %v107
    %v660 = vunpack.c.l.b16 %v108
    %v661 = vunpack.c.l.b16 %v109
    %v662 = vunpack.c.l.b16 %v110
    %v663 = vunpack.c.l.b16 %v111
    %v664 = vunpack.c.l.b16 %v112
    %v665 = vunpack.c.l.b16 %v113
    %v666 = vunpack.c.l.b16 %v114
    %v667 = vunpack.c.l.b16 %v115
    %v668 = vunpack.c.l.b16 %v116
    %v669 = vunpack.c.l.b16 %v117
    %v670 = vunpack.c.l.b16 %v118
    %v671 = vunpack.c.l.b16 %v119
    %v672 = vunpack.c.l.b16 %v120
    %v673 = vunpack.c.l.b16 %v121
    %v674 = vunpack.c.l.b16 %v122
    %v675 = vunpack.c.l.b16 %v123
    %v676 = vunpack.c.l.b16 %v124
    %v677 = vunpack.c.l.b16 %v125
    %v678 = vunpack.c.l.b16 %v126
    %v679 = vunpack.c.l.b16 %v127
    %v680 = vunpack.c.l.b16 %v128
    %v681 = vunpack.c.l.b16 %v129
    %v682 = vunpack.c.l.b16 %v130
    %v683 = vunpack.c.l.b16 %v131
    %v684 = vunpack.c.l.b16 %v132
    %v685 = vunpack.c.l.b16 %v133
    %v686 = vunpack.c.l.b16 %v134
    %v687 = vunpack.c.l.b16 %v135
    %v688 = vunpack.c.l.b16 %v136
    %v689 = vunpack.c.l.b16 %v137
    %v690 = vunpack.c.l.b16 %v138
    %v691 = vunpack.c.l.b16 %v139
    %v692 = vunpack.c.l.b16 %v140
    %v693 = vunpack.c.l.b16 %v141
    %v694 = vunpack.c.l.b16 %v142
    %v695 = vunpack.c.l.b16 %v143
    %v696 = vunpack.c.l.b16 %v144
    %v697 = vunpack.c.l.b16 %v145
    %v698 = vunpack.c.l.b16 %v146
    %v699 = vunpack.c.l.b16 %v147
    %v700 = vunpack.c.l.b16 %v148
    %v701 = vunpack.c.l.b16 %v149
    %v702 = vunpack.c.l.b16 %v150
    %v703 = vunpack.c.l.b16 %v151
    %v704 = vunpack.c.l.b16 %v152
    %v705 = vunpack.c.l.b16 %v153
    %v706 = vunpack.c.l.b16 %v154
    %v707 = vunpack.c.l.b16 %v155
    %v708 = vunpack.c.l.b16 %v156
    %v709 = vunpack.c.l.b16 %v157
    %v710 = vunpack.c.l.b16 %v158
    %v711 = vunpack.c.l.b16 %v159
    %v712 = vunpack.c.l.b16 %v160
    %v713 = vunpack.c.l.b16 %v161
    %v714 = vunpack.c.l.b16 %v162
    %v715 = vunpack.c.l.b16 %v163
    %v716 = vunpack.c.l.b16 %v164
    %v717 = vunpack.c.l.b16 %v165
    %v718 = vunpack.c.l.b16 %v166
    %v719 = vunpack.c.l.b16 %v167
    %v720 = vunpack.c.l.b16 %v168
    %v721 = vunpack.c.l.b16 %v169
    %v722 = vunpack.c.l.b16 %v170
    %v723 = vunpack.c.l.b16 %v171
    %v724 = vunpack.c.l.b16 %v172
    %v725 = vunpack.c.l.b16 %v173
    %v726 = vunpack.c.l.b16 %v174
    %v727 = vunpack.c.l.b16 %v175
    %v728 = vunpack.c.l.b16 %v176
    %v729 = vunpack.c.l.b16 %v177
    %v730 = vunpack.c.l.b16 %v178
    %v731 = vunpack.c.l.b16 %v179
    %v732 = vunpack.c.l.b16 %v180
    %v733 = vunpack.c.l.b16 %v181
    %v734 = vunpack.c.l.b16 %v182
    %v735 = vunpack.c.l.b16 %v183
    %v736 = vunpack.c.l.b16 %v184
    %v737 = vunpack.c.l.b16 %v185
    %v738 = vunpack.c.l.b16 %v186
    %v739 = vunpack.c.l.b16 %v187
    %v740 = vunpack.c.l.b16 %v188
    %v741 = vunpack.c.l.b16 %v189
    %v742 = vunpack.c.l.b16 %v190
    %v743 = vunpack.c.l.b16 %v191
    %v744 = vunpack.c.l.b16 %v192
    %v745 = vunpack.c.l.b16 %v193
    %v746 = vunpack.c.l.b16 %v194
    %v747 = vunpack.c.l.b16 %v195
    %v748 = vunpack.c.l.b16 %v196
    %v749 = vunpack.c.l.b16 %v197
    %v750 = vunpack.c.l.b16 %v198
    %v751 = vunpack.c.l.b16 %v199
    %v752 = vunpack.c.l.b16 %v200
    %v753 = vunpack.c.l.b16 %v201
    %v754 = vunpack.c.l.b16 %v202
    %v755 = vunpack.c.l.b16 %v203
    %v756 = vunpack.c.l.b16 %v204
    %v757 = vunpack.c.l.b16 %v205
    %v758 = vunpack.c.l.b16 %v206
    %v759 = vunpack.c.l.b16 %v207
    %v760 = vunpack.c.l.b16 %v208
    %v761 = vunpack.c.l.b16 %v209
    %v762 = vunpack.c.l.b16 %v210
    %v763 = vunpack.c.l.b16 %v211
    %v764 = vunpack.c.l.b16 %v212
    %v765 = vunpack.c.l.b16 %v213
    %v766 = vunpack.c.l.b16 %v214
    %v767 = vunpack.c.l.b16 %v215
    %v768 = vunpack.c.l.b16 %v216
    %v769 = vunpack.c.l.b16 %v217
    %v770 = vunpack.c.l.b16 %v218
    %v771 = vunpack.c.l.b16 %v219
    %v772 = vunpack.c.l.b16 %v220
    %v773 = vunpack.c.l.b16 %v221
    %v774 = vunpack.c.l.b16 %v222
    %v775 = vunpack.c.l.b16 %v223
    %v776 = vunpack.c.l.b16 %v224
    %v777 = vunpack.c.l.b16 %v225
    %v778 = vunpack.c.l.b16 %v226
    %v779 = vunpack.c.l.b16 %v227
    %v780 = vunpack.c.l.b16 %v228
    %v781 = vunpack.c.l.b16 %v229
    %v782 = vunpack.c.l.b16 %v230
    %v783 = vunpack.c.l.b16 %v231
    %v784 = vunpack.c.l.b16 %v232
    %v785 = vunpack.c.l.b16 %v233
    %v786 = vunpack.c.l.b16 %v234
    %v787 = vunpack.c.l.b16 %v235
    %v788 = vunpack.c.l.b16 %v236
    %v789 = vunpack.c.l.b16 %v237
    %v790 = vunpack.c.l.b16 %v238
    %v791 = vunpack.c.l.b16 %v239
    %v792 = vunpack.c.l.b16 %v240
    %v793 = vunpack.c.l.b16 %v241
    %v794 = vunpack.c.l.b16 %v242
    %v795 = vunpack.c.l.b16 %v243
    %v796 = vunpack.c.l.b16 %v244
    %v797 = vunpack.c.l.b16 %v245
    %v798 = vunpack.c.l.b16 %v246
    %v799 = vunpack.c.l.b16 %v247
    %v800 = vunpack.c.l.b16 %v248
    %v801 = vunpack.c.l.b16 %v249
    %v802 = vunpack.c.l.b16 %v250
    %v803 = vunpack.c.l.b16 %v251
    %v804 = vunpack.c.l.b16 %v252
    %v805 = vunpack.c.l.b16 %v253
    %v806 = vunpack.c.l.b16 %v254
    %v807 = vunpack.c.l.b16 %v255
    %v808 = vunpack.c.l.b16 %v256
    %v809 = vunpack.c.l.b16 %v257
    %v810 = vunpack.c.l.b16 %v258
    %v811 = vunpack.c.l.b16 %v259
    %v812 = vunpack.c.l.b16 %v260
    %v813 = vunpack.c.l.b16 %v261
    %v814 = vunpack.c.l.b16 %v262
    %v815 = vunpack.c.l.b16 %v263
    %v816 = vunpack.c.l.b16 %v264
    %v817 = vunpack.c.l.b16 %v265
    %v818 = vunpack.c.l.b16 %v266
    %v819 = vunpack.c.l.b16 %v267
    %v820 = vunpack.c.l.b16 %v268
    %v821 = vunpack.c.l.b16 %v269
    %v822 = vunpack.c.l.b16 %v270
    %v823 = vunpack.c.l.b16 %v271
    %v824 = vunpack.c.l.b16 %v272
    %v825 = vpack.c.b16 %v570, %v569
    %v826 = vpack.c.b16 %v572, %v571
    %v827 = vpack.c.b16 %v574, %v573
    %v828 = vpack.c.b16 %v576, %v575
    %v829 = vpack.c.b16 %v578, %v577
    %v830 = vpack.c.b16 %v580, %v579
    %v831 = vpack.c.b16 %v582, %v581
    %v832 = vpack.c.b16 %v584, %v583
    %v833 = vpack.c.b16 %v586, %v585
    %v834 = vpack.c.b16 %v588, %v587
    %v835 = vpack.c.b16 %v590, %v589
    %v836 = vpack.c.b16 %v592, %v591
    %v837 = vpack.c.b16 %v594, %v593
    %v838 = vpack.c.b16 %v596, %v595
    %v839 = vpack.c.b16 %v598, %v597
    %v840 = vpack.c.b16 %v600, %v599
    %v841 = vpack.c.b16 %v602, %v601
    %v842 = vpack.c.b16 %v604, %v603
    %v843 = vpack.c.b16 %v606, %v605
    %v844 = vpack.c.b16 %v608, %v607
    %v845 = vpack.c.b16 %v610, %v609
    %v846 = vpack.c.b16 %v612, %v611
    %v847 = vpack.c.b16 %v614, %v613
    %v848 = vpack.c.b16 %v616, %v615
    %v849 = vpack.c.b16 %v618, %v617
    %v850 = vpack.c.b16 %v620, %v619
    %v851 = vpack.c.b16 %v622, %v621
    %v852 = vpack.c.b16 %v624, %v623
    %v853 = vpack.c.b16 %v626, %v625
    %v854 = vpack.c.b16 %v628, %v627
    %v855 = vpack.c.b16 %v630, %v629
    %v856 = vpack.c.b16 %v632, %v631
    %v857 = vpack.c.b16 %v634, %v633
    %v858 = vpack.c.b16 %v636, %v635
    %v859 = vpack.c.b16 %v638, %v637
    %v860 = vpack.c.b16 %v640, %v639
    %v861 = vpack.c.b16 %v642, %v641
    %v862 = vpack.c.b16 %v644, %v643
    %v863 = vpack.c.b16 %v646, %v645
    %v864 = vpack.c.b16 %v648, %v647
    %v865 = vpack.c.b16 %v650, %v649
    %v866 = vpack.c.b16 %v652, %v651
    %v867 = vpack.c.b16 %v654, %v653
    %v868 = vpack.c.b16 %v656, %v655
    %v869 = vpack.c.b16 %v658, %v657
    %v870 = vpack.c.b16 %v660, %v659
    %v871 = vpack.c.b16 %v662, %v661
    %v872 = vpack.c.b16 %v664, %v663
    %v873 = vpack.c.b16 %v666, %v665
    %v874 = vpack.c.b16 %v668, %v667
    %v875 = vpack.c.b16 %v670, %v669
    %v876 = vpack.c.b16 %v672, %v671
    %v877 = vpack.c.b16 %v674, %v673
    %v878 = vpack.c.b16 %v676, %v675
    %v879 = vpack.c.b16 %v678, %v677
    %v880 = vpack.c.b16 %v680, %v679
    %v881 = vpack.c.b16 %v682, %v681
    %v882 = vpack.c.b16 %v684, %v683
    %v883 = vpack.c.b16 %v686, %v685
    %v884 = vpack.c.b16 %v688, %v687
    %v885 = vpack.c.b16 %v690, %v689
    %v886 = vpack.c.b16 %v692, %v691
    %v887 = vpack.c.b16 %v694, %v693
    %v888 = vpack.c.b16 %v696, %v695
    %v889 = vpack.c.b16 %v698, %v697
    %v890 = vpack.c.b16 %v700, %v699
    %v891 = vpack.c.b16 %v702, %v701
    %v892 = vpack.c.b16 %v704, %v703
    %v893 = vpack.c.b16 %v706, %v705
    %v894 = vpack.c.b16 %v708, %v707
    %v895 = vpack.c.b16 %v710, %v709
    %v896 = vpack.c.b16 %v712, %v711
    %v897 = vpack.c.b16 %v714, %v713
    %v898 = vpack.c.b16 %v716, %v715
    %v899 = vpack.c.b16 %v718, %v717
    %v900 = vpack.c.b16 %v720, %v719
    %v901 = vpack.c.b16 %v722, %v721
    %v902 = vpack.c.b16 %v724, %v723
    %v903 = vpack.c.b16 %v726, %v725
    %v904 = vpack.c.b16 %v728, %v727
    %v905 = vpack.c.b16 %v730, %v729
    %v906 = vpack.c.b16 %v732, %v731
    %v907 = vpack.c.b16 %v734, %v733
    %v908 = vpack.c.b16 %v736, %v735
    %v909 = vpack.c.b16 %v738, %v737
    %v910 = vpack.c.b16 %v740, %v739
    %v911 = vpack.c.b16 %v742, %v741
    %v912 = vpack.c.b16 %v744, %v743
    %v913 = vpack.c.b16 %v746, %v745
    %v914 = vpack.c.b16 %v748, %v747
    %v915 = vpack.c.b16 %v750, %v749
    %v916 = vpack.c.b16 %v752, %v751
    %v917 = vpack.c.b16 %v754, %v753
    %v918 = vpack.c.b16 %v756, %v755
    %v919 = vpack.c.b16 %v758, %v757
    %v920 = vpack.c.b16 %v760, %v759
    %v921 = vpack.c.b16 %v762, %v761
    %v922 = vpack.c.b16 %v764, %v763
    %v923 = vpack.c.b16 %v766, %v765
    %v924 = vpack.c.b16 %v768, %v767
    %v925 = vpack.c.b16 %v770, %v769
    %v926 = vpack.c.b16 %v772, %v771
    %v927 = vpack.c.b16 %v774, %v773
    %v928 = vpack.c.b16 %v776, %v775
    %v929 = vpack.c.b16 %v778, %v777
    %v930 = vpack.c.b16 %v780, %v779
    %v931 = vpack.c.b16 %v782, %v781
    %v932 = vpack.c.b16 %v784, %v783
    %v933 = vpack.c.b16 %v786, %v785
    %v934 = vpack.c.b16 %v788, %v787
    %v935 = vpack.c.b16 %v790, %v789
    %v936 = vpack.c.b16 %v792, %v791
    %v937 = vpack.c.b16 %v794, %v793
    %v938 = vpack.c.b16 %v796, %v795
    %v939 = vpack.c.b16 %v798, %v797
    %v940 = vpack.c.b16 %v800, %v799
    %v941 = vpack.c.b16 %v802, %v801
    %v942 = vpack.c.b16 %v804, %v803
    %v943 = vpack.c.b16 %v806, %v805
    %v944 = vpack.c.b16 %v808, %v807
    %v945 = vpack.c.b16 %v810, %v809
    %v946 = vpack.c.b16 %v812, %v811
    %v947 = vpack.c.b16 %v814, %v813
    %v948 = vpack.c.b16 %v816, %v815
    %v949 = vpack.c.b16 %v818, %v817
    %v950 = vpack.c.b16 %v820, %v819
    %v951 = vpack.c.b16 %v822, %v821
    %v952 = vpack.c.b16 %v824, %v823
    %1081 = vmatpush.bf16.msra.mxu0 %v832
    %1082 = vmatpush.bf16.msra.mxu0 %v831
    %1083 = vmatpush.bf16.msra.mxu0 %v830
    %1084 = vmatpush.bf16.msra.mxu0 %v829
    %1085 = vmatpush.bf16.msra.mxu0 %v828
    %1086 = vmatpush.bf16.msra.mxu0 %v827
    %1087 = vmatpush.bf16.msra.mxu0 %v826
    %1088 = vmatpush.bf16.msra.mxu0 %v825
    %1089 = vmatmul.bf16.gmra.mxu0 %v279
    %v1090 = vpop.f32.mrf.mxu0
    %v1091 = vadd.f32 %v275, %v1090
    %v1092 = vpop.f32.mrf.mxu0
    %1093 = vdwg.mxu0
    %1094 = vmatpush.bf16.msra.mxu0 %v840
    %1095 = vmatpush.bf16.msra.mxu0 %v839
    %1096 = vmatpush.bf16.msra.mxu0 %v838
    %1097 = vmatpush.bf16.msra.mxu0 %v837
    %1098 = vmatpush.bf16.msra.mxu0 %v836
    %1099 = vmatpush.bf16.msra.mxu0 %v835
    %1100 = vmatpush.bf16.msra.mxu0 %v834
    %1101 = vmatpush.bf16.msra.mxu0 %v833
    %1102 = vmatmul.bf16.gmra.mxu0 %v280
    %v1103 = vpop.f32.mrf.mxu0
    %v1104 = vadd.f32 %v1091, %v1103
    %v1105 = vpop.f32.mrf.mxu0
    %1106 = vdwg.mxu0
    %1107 = vmatpush.bf16.msra.mxu0 %v848
    %1108 = vmatpush.bf16.msra.mxu0 %v847
    %1109 = vmatpush.bf16.msra.mxu0 %v846
    %1110 = vmatpush.bf16.msra.mxu0 %v845
    %1111 = vmatpush.bf16.msra.mxu0 %v844
    %1112 = vmatpush.bf16.msra.mxu0 %v843
    %1113 = vmatpush.bf16.msra.mxu0 %v842
    %1114 = vmatpush.bf16.msra.mxu0 %v841
    %1115 = vmatmul.bf16.gmra.mxu0 %v281
    %v1116 = vpop.f32.mrf.mxu0
    %v1117 = vadd.f32 %v1104, %v1116
    %v1118 = vpop.f32.mrf.mxu0
    %1119 = vdwg.mxu0
    %1120 = vmatpush.bf16.msra.mxu0 %v856
    %1121 = vmatpush.bf16.msra.mxu0 %v855
    %1122 = vmatpush.bf16.msra.mxu0 %v854
    %1123 = vmatpush.bf16.msra.mxu0 %v853
    %1124 = vmatpush.bf16.msra.mxu0 %v852
    %1125 = vmatpush.bf16.msra.mxu0 %v851
    %1126 = vmatpush.bf16.msra.mxu0 %v850
    %1127 = vmatpush.bf16.msra.mxu0 %v849
    %1128 = vmatmul.bf16.gmra.mxu0 %v282
    %v1129 = vpop.f32.mrf.mxu0
    %v1130 = vadd.f32 %v1117, %v1129
    %v1131 = vpop.f32.mrf.mxu0
    %1132 = vdwg.mxu0
    %1133 = vmatpush.bf16.msra.mxu0 %v864
    %1134 = vmatpush.bf16.msra.mxu0 %v863
    %1135 = vmatpush.bf16.msra.mxu0 %v862
    %1136 = vmatpush.bf16.msra.mxu0 %v861
    %1137 = vmatpush.bf16.msra.mxu0 %v860
    %1138 = vmatpush.bf16.msra.mxu0 %v859
    %1139 = vmatpush.bf16.msra.mxu0 %v858
    %1140 = vmatpush.bf16.msra.mxu0 %v857
    %1141 = vmatmul.bf16.gmra.mxu0 %v283
    %v1142 = vpop.f32.mrf.mxu0
    %v1143 = vadd.f32 %v1130, %v1142
    %v1144 = vpop.f32.mrf.mxu0
    %1145 = vdwg.mxu0
    %1146 = vmatpush.bf16.msra.mxu0 %v872
    %1147 = vmatpush.bf16.msra.mxu0 %v871
    %1148 = vmatpush.bf16.msra.mxu0 %v870
    %1149 = vmatpush.bf16.msra.mxu0 %v869
    %1150 = vmatpush.bf16.msra.mxu0 %v868
    %1151 = vmatpush.bf16.msra.mxu0 %v867
    %1152 = vmatpush.bf16.msra.mxu0 %v866
    %1153 = vmatpush.bf16.msra.mxu0 %v865
    %1154 = vmatmul.bf16.gmra.mxu0 %v284
    %v1155 = vpop.f32.mrf.mxu0
    %v1156 = vadd.f32 %v1143, %v1155
    %v1157 = vpop.f32.mrf.mxu0
    %1158 = vdwg.mxu0
    %1159 = vmatpush.bf16.msra.mxu0 %v880
    %1160 = vmatpush.bf16.msra.mxu0 %v879
    %1161 = vmatpush.bf16.msra.mxu0 %v878
    %1162 = vmatpush.bf16.msra.mxu0 %v877
    %1163 = vmatpush.bf16.msra.mxu0 %v876
    %1164 = vmatpush.bf16.msra.mxu0 %v875
    %1165 = vmatpush.bf16.msra.mxu0 %v874
    %1166 = vmatpush.bf16.msra.mxu0 %v873
    %1167 = vmatmul.bf16.gmra.mxu0 %v285
    %v1168 = vpop.f32.mrf.mxu0
    %v1169 = vadd.f32 %v1156, %v1168
    %v1170 = vpop.f32.mrf.mxu0
    %1171 = vdwg.mxu0
    %1172 = vmatpush.bf16.msra.mxu0 %v888
    %1173 = vmatpush.bf16.msra.mxu0 %v887
    %1174 = vmatpush.bf16.msra.mxu0 %v886
    %1175 = vmatpush.bf16.msra.mxu0 %v885
    %1176 = vmatpush.bf16.msra.mxu0 %v884
    %1177 = vmatpush.bf16.msra.mxu0 %v883
    %1178 = vmatpush.bf16.msra.mxu0 %v882
    %1179 = vmatpush.bf16.msra.mxu0 %v881
    %1180 = vmatmul.bf16.gmra.mxu0 %v286
    %v1181 = vpop.f32.mrf.mxu0
    %v1182 = vadd.f32 %v1169, %v1181
    %v1183 = vpop.f32.mrf.mxu0
    %1184 = vdwg.mxu0
    %1185 = vmatpush.bf16.msra.mxu0 %v896
    %1186 = vmatpush.bf16.msra.mxu0 %v895
    %1187 = vmatpush.bf16.msra.mxu0 %v894
    %1188 = vmatpush.bf16.msra.mxu0 %v893
    %1189 = vmatpush.bf16.msra.mxu0 %v892
    %1190 = vmatpush.bf16.msra.mxu0 %v891
    %1191 = vmatpush.bf16.msra.mxu0 %v890
    %1192 = vmatpush.bf16.msra.mxu0 %v889
    %1193 = vmatmul.bf16.gmra.mxu0 %v289
    %v1194 = vpop.f32.mrf.mxu0
    %v1195 = vadd.f32 %v1182, %v1194
    %v1196 = vpop.f32.mrf.mxu0
    %1197 = vdwg.mxu0
    %1198 = vmatpush.bf16.msra.mxu0 %v904
    %1199 = vmatpush.bf16.msra.mxu0 %v903
    %1200 = vmatpush.bf16.msra.mxu0 %v902
    %1201 = vmatpush.bf16.msra.mxu0 %v901
    %1202 = vmatpush.bf16.msra.mxu0 %v900
    %1203 = vmatpush.bf16.msra.mxu0 %v899
    %1204 = vmatpush.bf16.msra.mxu0 %v898
    %1205 = vmatpush.bf16.msra.mxu0 %v897
    %1206 = vmatmul.bf16.gmra.mxu0 %v290
    %v1207 = vpop.f32.mrf.mxu0
    %v1208 = vadd.f32 %v1195, %v1207
    %v1209 = vpop.f32.mrf.mxu0
    %1210 = vdwg.mxu0
    %1211 = vmatpush.bf16.msra.mxu0 %v912
    %1212 = vmatpush.bf16.msra.mxu0 %v911
    %1213 = vmatpush.bf16.msra.mxu0 %v910
    %1214 = vmatpush.bf16.msra.mxu0 %v909
    %1215 = vmatpush.bf16.msra.mxu0 %v908
    %1216 = vmatpush.bf16.msra.mxu0 %v907
    %1217 = vmatpush.bf16.msra.mxu0 %v906
    %1218 = vmatpush.bf16.msra.mxu0 %v905
    %1219 = vmatmul.bf16.gmra.mxu0 %v291
    %v1220 = vpop.f32.mrf.mxu0
    %v1221 = vadd.f32 %v1208, %v1220
    %v1222 = vpop.f32.mrf.mxu0
    %1223 = vdwg.mxu0
    %1224 = vmatpush.bf16.msra.mxu0 %v920
    %1225 = vmatpush.bf16.msra.mxu0 %v919
    %1226 = vmatpush.bf16.msra.mxu0 %v918
    %1227 = vmatpush.bf16.msra.mxu0 %v917
    %1228 = vmatpush.bf16.msra.mxu0 %v916
    %1229 = vmatpush.bf16.msra.mxu0 %v915
    %1230 = vmatpush.bf16.msra.mxu0 %v914
    %1231 = vmatpush.bf16.msra.mxu0 %v913
    %1232 = vmatmul.bf16.gmra.mxu0 %v292
    %v1233 = vpop.f32.mrf.mxu0
    %v1234 = vadd.f32 %v1221, %v1233
    %v1235 = vpop.f32.mrf.mxu0
    %1236 = vdwg.mxu0
    %1237 = vmatpush.bf16.msra.mxu0 %v928
    %1238 = vmatpush.bf16.msra.mxu0 %v927
    %1239 = vmatpush.bf16.msra.mxu0 %v926
    %1240 = vmatpush.bf16.msra.mxu0 %v925
    %1241 = vmatpush.bf16.msra.mxu0 %v924
    %1242 = vmatpush.bf16.msra.mxu0 %v923
    %1243 = vmatpush.bf16.msra.mxu0 %v922
    %1244 = vmatpush.bf16.msra.mxu0 %v921
    %1245 = vmatmul.bf16.gmra.mxu0 %v293
    %v1246 = vpop.f32.mrf.mxu0
    %v1247 = vadd.f32 %v1234, %v1246
    %v1248 = vpop.f32.mrf.mxu0
    %1249 = vdwg.mxu0
    %1250 = vmatpush.bf16.msra.mxu0 %v936
    %1251 = vmatpush.bf16.msra.mxu0 %v935
    %1252 = vmatpush.bf16.msra.mxu0 %v934
    %1253 = vmatpush.bf16.msra.mxu0 %v933
    %1254 = vmatpush.bf16.msra.mxu0 %v932
    %1255 = vmatpush.bf16.msra.mxu0 %v931
    %1256 = vmatpush.bf16.msra.mxu0 %v930
    %1257 = vmatpush.bf16.msra.mxu0 %v929
    %1258 = vmatmul.bf16.gmra.mxu0 %v294
    %v1259 = vpop.f32.mrf.mxu0
    %v1260 = vadd.f32 %v1247, %v1259
    %v1261 = vpop.f32.mrf.mxu0
    %1262 = vdwg.mxu0
    %1263 = vmatpush.bf16.msra.mxu0 %v944
    %1264 = vmatpush.bf16.msra.mxu0 %v943
    %1265 = vmatpush.bf16.msra.mxu0 %v942
    %1266 = vmatpush.bf16.msra.mxu0 %v941
    %1267 = vmatpush.bf16.msra.mxu0 %v940
    %1268 = vmatpush.bf16.msra.mxu0 %v939
    %1269 = vmatpush.bf16.msra.mxu0 %v938
    %1270 = vmatpush.bf16.msra.mxu0 %v937
    %1271 = vmatmul.bf16.gmra.mxu0 %v295
    %v1272 = vpop.f32.mrf.mxu0
    %v1273 = vadd.f32 %v1260, %v1272
    %v1274 = vpop.f32.mrf.mxu0
    %1275 = vdwg.mxu0
    %1276 = vmatpush.bf16.msra.mxu0 %v952
    %1277 = vmatpush.bf16.msra.mxu0 %v951
    %1278 = vmatpush.bf16.msra.mxu0 %v950
    %1279 = vmatpush.bf16.msra.mxu0 %v949
    %1280 = vmatpush.bf16.msra.mxu0 %v948
    %1281 = vmatpush.bf16.msra.mxu0 %v947
    %1282 = vmatpush.bf16.msra.mxu0 %v946
    %1283 = vmatpush.bf16.msra.mxu0 %v945
    %1284 = vmatmul.bf16.gmra.mxu0 %v296
    %v1285 = vpop.f32.mrf.mxu0
    %v1286 = vadd.f32 %v1273, %v1285
    %v1287 = vpop.f32.mrf.mxu0
    %1288 = vdwg.mxu0
    %1289 = vst [vmem:[#allocation2] sm:$0x3] %v1286
    // Predicated region
    $region14: #{classifier_forward.1} parent=1 // pred_check
      _
    $region15: #{classifier_forward.1} parent=1 // pred_check_branch
      %1291 = sbr.rel (0) target = $region17
    $region16: #{classifier_forward.1} parent=1 // pred_region
      %1293 = vsyncadd [#allocation3], 0
      %s1295 = sshll.u32 [#allocation2], 4
      %s1296 = int_to_ptr.vmem [resolvable:$true] %s1295
      %s1297 = sshll.u32 %s3, 4
      %s1298 = int_to_ptr.hbm [resolvable:$true] %s1297
      %1300 = dma.vmem_to_hbm [thread:$0]  %s1296, 32, %s1298, [#allocation3]
    $region17: #{classifier_forward.1} parent=1 // pred_fallthru
      _
    // Predicated region
    $region18: #{classifier_forward.1} parent=1 // pred_check
      _
    $region19: #{classifier_forward.1} parent=1 // pred_check_branch
      %1302 = sbr.rel (0) target = $region21
    $region20: #{classifier_forward.1} parent=1 // pred_region
      %1304 = dma.done [#allocation3], 32
    $region21: #{classifier_forward.1} parent=1 // pred_fallthru
      _
    %1305 = vsyncpa [#allocation3], 1

</llo_original>
